<compile_context>
chip_gen: v6e
topology: v6e:2x2x1
jax: 0.10.0
libtpu: 0.0.40
codegen_flags: <defaults>
</compile_context>

<pallas_src>
import jax
import jax.numpy as jnp
from jax.experimental import pallas as pl
from jax.experimental.pallas import tpu as pltpu

WAY = 4                    # `way`
SHOTS = 2                  # samples per way  -> N = WAY * SHOTS
N = WAY * SHOTS
C, H, W = 3, 16, 16
FEAT = C * H * W           # 768  (multiple of 128)
D = 128                    # small stand-in for resnet34's 1000-dim output
PADW = 128                 # lane-dense padded output width (>= WAY, mult of 128)


# ------------------------- fused Pallas kernel -------------------------------

def _fused_meta_kernel(x_ref, proj_ref, wl_ref, bl_ref, theta_ref, bm_ref, o_ref):
    # 1) embedding (stand-in backbone): (N, FEAT) @ (FEAT, D) -> (N, D)
    emb = jnp.dot(x_ref[...], proj_ref[...], preferred_element_type=jnp.float32)

    # 2) group mean over strided groups data[w::WAY]  -> (WAY, D)
    #    (direct sublane slices + VPU add; no iota / mod / select / matmul)
    mean_emb = emb[0:WAY, :]
    for s in range(1, SHOTS):
        mean_emb = mean_emb + emb[s * WAY:(s + 1) * WAY, :]
    mean_emb = mean_emb * (1.0 / SHOTS)

    # 3) Learner (Linear D->D): landa = mean_emb @ Wl^T + bl   -> (WAY, D)
    landa = jax.lax.dot_general(
        mean_emb, wl_ref[...], (((1,), (1,)), ((), ())),
        preferred_element_type=jnp.float32) + bl_ref[...]

    # 4) new fc1 weight = theta + landa, padded to (PADW, D) so the final
    #    store is lane-dense. theta_ref rows >= WAY are zero; the tiled landa
    #    rows >= WAY only feed output columns that the caller slices off.
    new_w_pad = theta_ref[...] + jnp.tile(landa, (PADW // WAY, 1))

    # 5) MetaLearner: predict = emb @ new_W^T + b  -> (N, PADW), full-width vst
    o_ref[...] = jax.lax.dot_general(
        emb, new_w_pad, (((1,), (1,)), ((), ())),
        preferred_element_type=jnp.float32) + bm_ref[...]


def fused_meta_predict(x_flat, proj, w_learner, b_learner, theta_pad, b_meta_pad):
    n = x_flat.shape[0]
    vmem = pl.BlockSpec(memory_space=pltpu.MemorySpace.VMEM)
    return pl.pallas_call(
        _fused_meta_kernel,
        out_shape=jax.ShapeDtypeStruct((n, PADW), jnp.float32),
        in_specs=[vmem, vmem, vmem, vmem, vmem, vmem],
        out_specs=vmem,
    )(x_flat, proj, w_learner, b_learner.reshape(1, -1), theta_pad, b_meta_pad)


# ------------------------- wrapper (glue, jitted) -----------------------------

@jax.jit
def model_forward(train_data, train_label, test_data, params):
    """Mirrors Model.forward in 'meta-train' mode; returns test_predict."""
    # Inner update loop and its train-embedding have no effect on the returned
    # test_predict (meta params restored afterwards) -> dead work, removed.
    del train_data, train_label
    proj, w_learner, b_learner, theta, b_meta = params

    test_flat = test_data.reshape(test_data.shape[0], -1)

    # Pad meta params for a lane-dense (multiple-of-128) output block.
    theta_pad = jnp.zeros((PADW, D), jnp.float32).at[:WAY, :].set(theta)
    b_meta_pad = jnp.zeros((1, PADW), jnp.float32).at[0, :WAY].set(b_meta)

    pred_pad = fused_meta_predict(test_flat, proj, w_learner, b_learner,
                                  theta_pad, b_meta_pad)
    return pred_pad[:, :WAY]


def _reference(train_data, train_label, test_data, params):
    del train_data, train_label
    proj, w_learner, b_learner, theta, b_meta = params
    emb = test_data.reshape(test_data.shape[0], -1) @ proj
    grouped = jnp.stack([emb[w::WAY] for w in range(WAY)], axis=0)   # (way,K,D)
    mean_emb = grouped.mean(axis=1)                                  # (way,D)
    landa = mean_emb @ w_learner.T + b_learner                       # (way,D)
    new_w = theta + landa
    return emb @ new_w.T + b_meta                                    # (N,way)


# ------------------------------ main ------------------------------------------

if __name__ == "__main__":
    key = jax.random.PRNGKey(0)
    k1, k2, k3, k4, k5, k6, k7 = jax.random.split(key, 7)

    # deterministic synthetic parameters
    proj = jax.random.normal(k1, (FEAT, D), jnp.float32) * 0.02   # stand-in pretrain
    w_learner = jax.random.normal(k2, (D, D), jnp.float32) * 0.05  # Learner fc (D->D)
    b_learner = jax.random.normal(k3, (D,), jnp.float32) * 0.01
    theta = jax.random.normal(k4, (WAY, D), jnp.float32) * 0.05    # MetaLearner fc1.weight
    b_meta = jax.random.normal(k5, (WAY,), jnp.float32) * 0.01     # MetaLearner fc1.bias
    params = (proj, w_learner, b_learner, theta, b_meta)

    # deterministic synthetic episode data (train/test NCHW images + labels)
    train_data = jax.random.normal(k6, (N, C, H, W), jnp.float32)
    test_data = jax.random.normal(k7, (N, C, H, W), jnp.float32)
    train_label = jnp.tile(jnp.arange(WAY, dtype=jnp.int32), SHOTS)

    out = model_forward(train_data, train_label, test_data, params)
    out = jax.block_until_ready(out)

    ref = _reference(train_data, train_label, test_data, params)
    assert out.shape == (N, WAY)
    assert jnp.allclose(out, ref, atol=1e-4, rtol=1e-4), "mismatch vs reference"

    print("KERNEL_OK")
</pallas_src>

<mosaic_0001>
module attributes {stable_mosaic.version = 11 : i64} {
  func.func @_fused_meta_kernel(%arg0: memref<8x768xf32, #tpu.memory_space<vmem>>, %arg1: memref<768x128xf32, #tpu.memory_space<vmem>>, %arg2: memref<128x128xf32, #tpu.memory_space<vmem>>, %arg3: memref<1x128xf32, #tpu.memory_space<vmem>>, %arg4: memref<128x128xf32, #tpu.memory_space<vmem>>, %arg5: memref<1x128xf32, #tpu.memory_space<vmem>>, %arg6: memref<8x128xf32, #tpu.memory_space<vmem>>) attributes {dimension_semantics = [], scalar_prefetch = 0 : i64, scratch_operands = 0 : i64, tpu.core_type = #tpu.core_type<tc>} {
    %c0 = arith.constant 0 : index
    %c0_0 = arith.constant 0 : index
    %0 = vector.load %arg0[%c0, %c0_0] : memref<8x768xf32, #tpu.memory_space<vmem>>, vector<8x768xf32>
    %c0_1 = arith.constant 0 : index
    %c0_2 = arith.constant 0 : index
    %1 = vector.load %arg1[%c0_1, %c0_2] : memref<768x128xf32, #tpu.memory_space<vmem>>, vector<768x128xf32>
    %cst = arith.constant dense<0.000000e+00> : vector<8x128xf32>
    %2 = tpu.matmul %0, %1, %cst {dimension_numbers = #tpu.dot_dimension_numbers<[1], [0], [0], [1], [0, 0, 1, 1], [], []>} : vector<8x768xf32>, vector<768x128xf32>, vector<8x128xf32> -> vector<8x128xf32>
    %3 = vector.extract_strided_slice %2 {offsets = [0, 0], sizes = [4, 128], strides = [1, 1]} : vector<8x128xf32> to vector<4x128xf32>
    %4 = vector.extract_strided_slice %2 {offsets = [4, 0], sizes = [4, 128], strides = [1, 1]} : vector<8x128xf32> to vector<4x128xf32>
    %5 = arith.addf %3, %4 : vector<4x128xf32>
    %cst_3 = arith.constant 5.000000e-01 : f32
    %6 = vector.broadcast %cst_3 : f32 to vector<4x128xf32>
    %7 = arith.mulf %5, %6 : vector<4x128xf32>
    %c0_4 = arith.constant 0 : index
    %c0_5 = arith.constant 0 : index
    %8 = vector.load %arg2[%c0_4, %c0_5] : memref<128x128xf32, #tpu.memory_space<vmem>>, vector<128x128xf32>
    %cst_6 = arith.constant dense<0.000000e+00> : vector<4x128xf32>
    %9 = tpu.matmul %7, %8, %cst_6 {dimension_numbers = #tpu.dot_dimension_numbers<[1], [1], [0], [0], [0, 0, 1, 0], [], []>} : vector<4x128xf32>, vector<128x128xf32>, vector<4x128xf32> -> vector<4x128xf32>
    %c0_7 = arith.constant 0 : index
    %c0_8 = arith.constant 0 : index
    %10 = vector.load %arg3[%c0_7, %c0_8] : memref<1x128xf32, #tpu.memory_space<vmem>>, vector<1x128xf32>
    %11 = vector.broadcast %10 : vector<1x128xf32> to vector<4x128xf32>
    %12 = arith.addf %9, %11 : vector<4x128xf32>
    %c0_9 = arith.constant 0 : index
    %c0_10 = arith.constant 0 : index
    %13 = vector.load %arg4[%c0_9, %c0_10] : memref<128x128xf32, #tpu.memory_space<vmem>>, vector<128x128xf32>
    %14 = tpu.concatenate %12, %12, %12, %12, %12, %12, %12, %12, %12, %12, %12, %12, %12, %12, %12, %12, %12, %12, %12, %12, %12, %12, %12, %12, %12, %12, %12, %12, %12, %12, %12, %12 in 0 : vector<4x128xf32>, vector<4x128xf32>, vector<4x128xf32>, vector<4x128xf32>, vector<4x128xf32>, vector<4x128xf32>, vector<4x128xf32>, vector<4x128xf32>, vector<4x128xf32>, vector<4x128xf32>, vector<4x128xf32>, vector<4x128xf32>, vector<4x128xf32>, vector<4x128xf32>, vector<4x128xf32>, vector<4x128xf32>, vector<4x128xf32>, vector<4x128xf32>, vector<4x128xf32>, vector<4x128xf32>, vector<4x128xf32>, vector<4x128xf32>, vector<4x128xf32>, vector<4x128xf32>, vector<4x128xf32>, vector<4x128xf32>, vector<4x128xf32>, vector<4x128xf32>, vector<4x128xf32>, vector<4x128xf32>, vector<4x128xf32>, vector<4x128xf32> -> vector<128x128xf32>
    %15 = arith.addf %13, %14 : vector<128x128xf32>
    %cst_11 = arith.constant dense<0.000000e+00> : vector<8x128xf32>
    %16 = tpu.matmul %2, %15, %cst_11 {dimension_numbers = #tpu.dot_dimension_numbers<[1], [1], [0], [0], [0, 0, 1, 0], [], []>} : vector<8x128xf32>, vector<128x128xf32>, vector<8x128xf32> -> vector<8x128xf32>
    %c0_12 = arith.constant 0 : index
    %c0_13 = arith.constant 0 : index
    %17 = vector.load %arg5[%c0_12, %c0_13] : memref<1x128xf32, #tpu.memory_space<vmem>>, vector<1x128xf32>
    %18 = vector.broadcast %17 : vector<1x128xf32> to vector<8x128xf32>
    %19 = arith.addf %16, %18 : vector<8x128xf32>
    %c0_14 = arith.constant 0 : index
    %c0_15 = arith.constant 0 : index
    %20 = vector.load %arg6[%c0_14, %c0_15] : memref<8x128xf32, #tpu.memory_space<vmem>>, vector<8x128xf32>
    tpu.vector_store %arg6[%c0_14, %c0_15], %19 {strides = array<i32>} : memref<8x128xf32, #tpu.memory_space<vmem>>, vector<8x128xf32>,
    return
  }
}

</mosaic_0001>

<llo_original>
// kernel: model_forward.1
$region0: #{model_forward.1}
  #allocation0 [shape = 'u32[]', space=smem, size = 0x4, offset = 0x4, fixed_abs, tag = 'smem constant byte address 0x4 - core index']
  #allocation1 [shape = 'u32[144,128]{1,0:T(1,128)}', space=vmem, size = 0x12000, scoped, tag = 'internal scratch']
  %s0 = inlined_call_operand.vmem [shape: f32[8,768], index: 0, kind: input, shape index: {}]
  %s1 = inlined_call_operand.hbm [shape: f32[768,128], index: 1, kind: input, shape index: {}]
  %s2 = inlined_call_operand.vmem [shape: f32[128,128], index: 2, kind: input, shape index: {}]
  %s3 = inlined_call_operand.vmem [shape: f32[1,128], index: 3, kind: input, shape index: {}]
  %s4 = inlined_call_operand.vmem [shape: f32[128,128], index: 4, kind: input, shape index: {}]
  %s5 = inlined_call_operand.vmem [shape: f32[1,128], index: 5, kind: input, shape index: {}]
  %s6 = inlined_call_operand.vmem [shape: f32[8,128], index: 6, kind: output, shape index: {}]
  %s7 = sld [smem:[#allocation0]]
  $region38: #{model_forward.1} parent=0
    _
  %s9 = ssub.s32 1, %s7
  %s10 = scalar_select 0, %s9, %s7
  $region1: #{model_forward.1} parent=0
    #allocation2 [shape = 'u8[393216]{0}', space=vmem, size = 0x60000, scoped, tag = 'input window, operand 1, single buffered']
    #allocation3 [shape = 's32[1]{0}', space=sflag, size = 0x4, scoped, tag = 'scoped memory for model_forward.1']
    %11 = vsyncpa [#allocation3], 0
    // Predicated region
    $region2: #{model_forward.1} parent=1 // pred_check
      _
    $region3: #{model_forward.1} parent=1 // pred_check_branch
      %13 = sbr.rel (0) target = $region5
    $region4: #{model_forward.1} parent=1 // pred_region
      _
    $region5: #{model_forward.1} parent=1 // pred_fallthru
      _
    // Predicated region
    $region6: #{model_forward.1} parent=1 // pred_check
      _
    $region7: #{model_forward.1} parent=1 // pred_check_branch
      %15 = sbr.rel (0) target = $region9
    $region8: #{model_forward.1} parent=1 // pred_region
      %s17 = ssub.s32 12288, 12288
      %18 = vsyncadd [#allocation3], %s17
      %s19 = sshll.u32 [#allocation2], 4
      %s20 = int_to_ptr.vmem [resolvable:$true] %s19
      %25 = dma.hbm_to_vmem [thread:$0]  %s1, 12288, %s20, [#allocation3], 128, 128, 8
    $region9: #{model_forward.1} parent=1 // pred_fallthru
      _
    // Predicated region
    $region10: #{model_forward.1} parent=1 // pred_check
      _
    $region11: #{model_forward.1} parent=1 // pred_check_branch
      %27 = sbr.rel (0) target = $region13
    $region12: #{model_forward.1} parent=1 // pred_region
      _
    $region13: #{model_forward.1} parent=1 // pred_fallthru
      _
    // Predicated region
    $region14: #{model_forward.1} parent=1 // pred_check
      _
    $region15: #{model_forward.1} parent=1 // pred_check_branch
      %29 = sbr.rel (0) target = $region17
    $region16: #{model_forward.1} parent=1 // pred_region
      _
    $region17: #{model_forward.1} parent=1 // pred_fallthru
      _
    // Predicated region
    $region18: #{model_forward.1} parent=1 // pred_check
      _
    $region19: #{model_forward.1} parent=1 // pred_check_branch
      %31 = sbr.rel (0) target = $region21
    $region20: #{model_forward.1} parent=1 // pred_region
      _
    $region21: #{model_forward.1} parent=1 // pred_fallthru
      _
    // Predicated region
    $region22: #{model_forward.1} parent=1 // pred_check
      _
    $region23: #{model_forward.1} parent=1 // pred_check_branch
      %33 = sbr.rel (0) target = $region25
    $region24: #{model_forward.1} parent=1 // pred_region
      _
    $region25: #{model_forward.1} parent=1 // pred_fallthru
      _
    // Predicated region
    $region26: #{model_forward.1} parent=1 // pred_check
      _
    $region27: #{model_forward.1} parent=1 // pred_check_branch
      %35 = sbr.rel (0) target = $region29
    $region28: #{model_forward.1} parent=1 // pred_region
      %36 = dma.done [#allocation3], 12288
    $region29: #{model_forward.1} parent=1 // pred_fallthru
      _
    %v37 = vld [vmem:[%s0] sm:$0xff]
    %v38 = vld [vmem:[%s0 + $0x8] sm:$0xff]
    %v39 = vld [vmem:[%s0 + $0x10] sm:$0xff]
    %v40 = vld [vmem:[%s0 + $0x18] sm:$0xff]
    %v41 = vld [vmem:[%s0 + $0x20] sm:$0xff]
    %v42 = vld [vmem:[%s0 + $0x28] sm:$0xff]
    %v43 = vld [vmem:[#allocation2] sm:$0xff]
    %v44 = vld [vmem:[#allocation2 + $0x8] sm:$0xff]
    %v45 = vld [vmem:[#allocation2 + $0x10] sm:$0xff]
    %v46 = vld [vmem:[#allocation2 + $0x18] sm:$0xff]
    %v47 = vld [vmem:[#allocation2 + $0x20] sm:$0xff]
    %v48 = vld [vmem:[#allocation2 + $0x28] sm:$0xff]
    %v49 = vld [vmem:[#allocation2 + $0x30] sm:$0xff]
    %v50 = vld [vmem:[#allocation2 + $0x38] sm:$0xff]
    %v51 = vld [vmem:[#allocation2 + $0x40] sm:$0xff]
    %v52 = vld [vmem:[#allocation2 + $0x48] sm:$0xff]
    %v53 = vld [vmem:[#allocation2 + $0x50] sm:$0xff]
    %v54 = vld [vmem:[#allocation2 + $0x58] sm:$0xff]
    %v55 = vld [vmem:[#allocation2 + $0x60] sm:$0xff]
    %v56 = vld [vmem:[#allocation2 + $0x68] sm:$0xff]
    %v57 = vld [vmem:[#allocation2 + $0x70] sm:$0xff]
    %v58 = vld [vmem:[#allocation2 + $0x78] sm:$0xff]
    %v59 = vld [vmem:[#allocation2 + $0x80] sm:$0xff]
    %v60 = vld [vmem:[#allocation2 + $0x88] sm:$0xff]
    %v61 = vld [vmem:[#allocation2 + $0x90] sm:$0xff]
    %v62 = vld [vmem:[#allocation2 + $0x98] sm:$0xff]
    %v63 = vld [vmem:[#allocation2 + $0xa0] sm:$0xff]
    %v64 = vld [vmem:[#allocation2 + $0xa8] sm:$0xff]
    %v65 = vld [vmem:[#allocation2 + $0xb0] sm:$0xff]
    %v66 = vld [vmem:[#allocation2 + $0xb8] sm:$0xff]
    %v67 = vld [vmem:[#allocation2 + $0xc0] sm:$0xff]
    %v68 = vld [vmem:[#allocation2 + $0xc8] sm:$0xff]
    %v69 = vld [vmem:[#allocation2 + $0xd0] sm:$0xff]
    %v70 = vld [vmem:[#allocation2 + $0xd8] sm:$0xff]
    %v71 = vld [vmem:[#allocation2 + $0xe0] sm:$0xff]
    %v72 = vld [vmem:[#allocation2 + $0xe8] sm:$0xff]
    %v73 = vld [vmem:[#allocation2 + $0xf0] sm:$0xff]
    %v74 = vld [vmem:[#allocation2 + $0xf8] sm:$0xff]
    %v75 = vld [vmem:[#allocation2 + $0x100] sm:$0xff]
    %v76 = vld [vmem:[#allocation2 + $0x108] sm:$0xff]
    %v77 = vld [vmem:[#allocation2 + $0x110] sm:$0xff]
    %v78 = vld [vmem:[#allocation2 + $0x118] sm:$0xff]
    %v79 = vld [vmem:[#allocation2 + $0x120] sm:$0xff]
    %v80 = vld [vmem:[#allocation2 + $0x128] sm:$0xff]
    %v81 = vld [vmem:[#allocation2 + $0x130] sm:$0xff]
    %v82 = vld [vmem:[#allocation2 + $0x138] sm:$0xff]
    %v83 = vld [vmem:[#allocation2 + $0x140] sm:$0xff]
    %v84 = vld [vmem:[#allocation2 + $0x148] sm:$0xff]
    %v85 = vld [vmem:[#allocation2 + $0x150] sm:$0xff]
    %v86 = vld [vmem:[#allocation2 + $0x158] sm:$0xff]
    %v87 = vld [vmem:[#allocation2 + $0x160] sm:$0xff]
    %v88 = vld [vmem:[#allocation2 + $0x168] sm:$0xff]
    %v89 = vld [vmem:[#allocation2 + $0x170] sm:$0xff]
    %v90 = vld [vmem:[#allocation2 + $0x178] sm:$0xff]
    %v91 = vld [vmem:[#allocation2 + $0x180] sm:$0xff]
    %v92 = vld [vmem:[#allocation2 + $0x188] sm:$0xff]
    %v93 = vld [vmem:[#allocation2 + $0x190] sm:$0xff]
    %v94 = vld [vmem:[#allocation2 + $0x198] sm:$0xff]
    %v95 = vld [vmem:[#allocation2 + $0x1a0] sm:$0xff]
    %v96 = vld [vmem:[#allocation2 + $0x1a8] sm:$0xff]
    %v97 = vld [vmem:[#allocation2 + $0x1b0] sm:$0xff]
    %v98 = vld [vmem:[#allocation2 + $0x1b8] sm:$0xff]
    %v99 = vld [vmem:[#allocation2 + $0x1c0] sm:$0xff]
    %v100 = vld [vmem:[#allocation2 + $0x1c8] sm:$0xff]
    %v101 = vld [vmem:[#allocation2 + $0x1d0] sm:$0xff]
    %v102 = vld [vmem:[#allocation2 + $0x1d8] sm:$0xff]
    %v103 = vld [vmem:[#allocation2 + $0x1e0] sm:$0xff]
    %v104 = vld [vmem:[#allocation2 + $0x1e8] sm:$0xff]
    %v105 = vld [vmem:[#allocation2 + $0x1f0] sm:$0xff]
    %v106 = vld [vmem:[#allocation2 + $0x1f8] sm:$0xff]
    %v107 = vld [vmem:[#allocation2 + $0x200] sm:$0xff]
    %v108 = vld [vmem:[#allocation2 + $0x208] sm:$0xff]
    %v109 = vld [vmem:[#allocation2 + $0x210] sm:$0xff]
    %v110 = vld [vmem:[#allocation2 + $0x218] sm:$0xff]
    %v111 = vld [vmem:[#allocation2 + $0x220] sm:$0xff]
    %v112 = vld [vmem:[#allocation2 + $0x228] sm:$0xff]
    %v113 = vld [vmem:[#allocation2 + $0x230] sm:$0xff]
    %v114 = vld [vmem:[#allocation2 + $0x238] sm:$0xff]
    %v115 = vld [vmem:[#allocation2 + $0x240] sm:$0xff]
    %v116 = vld [vmem:[#allocation2 + $0x248] sm:$0xff]
    %v117 = vld [vmem:[#allocation2 + $0x250] sm:$0xff]
    %v118 = vld [vmem:[#allocation2 + $0x258] sm:$0xff]
    %v119 = vld [vmem:[#allocation2 + $0x260] sm:$0xff]
    %v120 = vld [vmem:[#allocation2 + $0x268] sm:$0xff]
    %v121 = vld [vmem:[#allocation2 + $0x270] sm:$0xff]
    %v122 = vld [vmem:[#allocation2 + $0x278] sm:$0xff]
    %v123 = vld [vmem:[#allocation2 + $0x280] sm:$0xff]
    %v124 = vld [vmem:[#allocation2 + $0x288] sm:$0xff]
    %v125 = vld [vmem:[#allocation2 + $0x290] sm:$0xff]
    %v126 = vld [vmem:[#allocation2 + $0x298] sm:$0xff]
    %v127 = vld [vmem:[#allocation2 + $0x2a0] sm:$0xff]
    %v128 = vld [vmem:[#allocation2 + $0x2a8] sm:$0xff]
    %v129 = vld [vmem:[#allocation2 + $0x2b0] sm:$0xff]
    %v130 = vld [vmem:[#allocation2 + $0x2b8] sm:$0xff]
    %v131 = vld [vmem:[#allocation2 + $0x2c0] sm:$0xff]
    %v132 = vld [vmem:[#allocation2 + $0x2c8] sm:$0xff]
    %v133 = vld [vmem:[#allocation2 + $0x2d0] sm:$0xff]
    %v134 = vld [vmem:[#allocation2 + $0x2d8] sm:$0xff]
    %v135 = vld [vmem:[#allocation2 + $0x2e0] sm:$0xff]
    %v136 = vld [vmem:[#allocation2 + $0x2e8] sm:$0xff]
    %v137 = vld [vmem:[#allocation2 + $0x2f0] sm:$0xff]
    %v138 = vld [vmem:[#allocation2 + $0x2f8] sm:$0xff]
    %139 = vmatprep.subr.mxu0 0.0
    %140 = vmatpush1.msra.mxu0 %v58
    %141 = vmatprep.subr.mxu0 0.0
    %142 = vmatpush1.msra.mxu0 %v57
    %143 = vmatprep.subr.mxu0 0.0
    %144 = vmatpush1.msra.mxu0 %v56
    %145 = vmatprep.subr.mxu0 0.0
    %146 = vmatpush1.msra.mxu0 %v55
    %147 = vmatprep.subr.mxu0 0.0
    %148 = vmatpush1.msra.mxu0 %v54
    %149 = vmatprep.subr.mxu0 0.0
    %150 = vmatpush1.msra.mxu0 %v53
    %151 = vmatprep.subr.mxu0 0.0
    %152 = vmatpush1.msra.mxu0 %v52
    %153 = vmatprep.subr.mxu0 0.0
    %154 = vmatpush1.msra.mxu0 %v51
    %155 = vmatprep.subr.mxu0 0.0
    %156 = vmatpush1.msra.mxu0 %v50
    %157 = vmatprep.subr.mxu0 0.0
    %158 = vmatpush1.msra.mxu0 %v49
    %159 = vmatprep.subr.mxu0 0.0
    %160 = vmatpush1.msra.mxu0 %v48
    %161 = vmatprep.subr.mxu0 0.0
    %162 = vmatpush1.msra.mxu0 %v47
    %163 = vmatprep.subr.mxu0 0.0
    %164 = vmatpush1.msra.mxu0 %v46
    %165 = vmatprep.subr.mxu0 0.0
    %166 = vmatpush1.msra.mxu0 %v45
    %167 = vmatprep.subr.mxu0 0.0
    %168 = vmatpush1.msra.mxu0 %v44
    %169 = vmatprep.subr.mxu0 0.0
    %170 = vmatpush1.msra.mxu0 %v43
    %171 = vmatprep.subr.mxu0 0.0
    %172 = vmatpush2.msra.mxu0 %v74
    %173 = vmatprep.subr.mxu0 0.0
    %174 = vmatpush2.msra.mxu0 %v73
    %175 = vmatprep.subr.mxu0 0.0
    %176 = vmatpush2.msra.mxu0 %v72
    %177 = vmatprep.subr.mxu0 0.0
    %178 = vmatpush2.msra.mxu0 %v71
    %179 = vmatprep.subr.mxu0 0.0
    %180 = vmatpush2.msra.mxu0 %v70
    %181 = vmatprep.subr.mxu0 0.0
    %182 = vmatpush2.msra.mxu0 %v69
    %183 = vmatprep.subr.mxu0 0.0
    %184 = vmatpush2.msra.mxu0 %v68
    %185 = vmatprep.subr.mxu0 0.0
    %186 = vmatpush2.msra.mxu0 %v67
    %187 = vmatprep.subr.mxu0 0.0
    %188 = vmatpush2.msra.mxu0 %v66
    %189 = vmatprep.subr.mxu0 0.0
    %190 = vmatpush2.msra.mxu0 %v65
    %191 = vmatprep.subr.mxu0 0.0
    %192 = vmatpush2.msra.mxu0 %v64
    %193 = vmatprep.subr.mxu0 0.0
    %194 = vmatpush2.msra.mxu0 %v63
    %195 = vmatprep.subr.mxu0 0.0
    %196 = vmatpush2.msra.mxu0 %v62
    %197 = vmatprep.subr.mxu0 0.0
    %198 = vmatpush2.msra.mxu0 %v61
    %199 = vmatprep.subr.mxu0 0.0
    %200 = vmatpush2.msra.mxu0 %v60
    %201 = vmatprep.subr.mxu0 0.0
    %202 = vmatpush2.msra.mxu0 %v59
    %203 = vmatprep.mubr.f32.mxu0 %v38
    %204 = vmatmul.mubr.f32.gmra.mxu0 %v37
    %v205 = vpop.f32.mrf.mxu0
    %v206 = vadd.f32 0.0, %v205
    %v207 = vpop.f32.mrf.mxu0
    %208 = vdwg.mxu0
    %209 = vmatprep.subr.mxu0 0.0
    %210 = vmatpush1.msra.mxu0 %v90
    %211 = vmatprep.subr.mxu0 0.0
    %212 = vmatpush1.msra.mxu0 %v89
    %213 = vmatprep.subr.mxu0 0.0
    %214 = vmatpush1.msra.mxu0 %v88
    %215 = vmatprep.subr.mxu0 0.0
    %216 = vmatpush1.msra.mxu0 %v87
    %217 = vmatprep.subr.mxu0 0.0
    %218 = vmatpush1.msra.mxu0 %v86
    %219 = vmatprep.subr.mxu0 0.0
    %220 = vmatpush1.msra.mxu0 %v85
    %221 = vmatprep.subr.mxu0 0.0
    %222 = vmatpush1.msra.mxu0 %v84
    %223 = vmatprep.subr.mxu0 0.0
    %224 = vmatpush1.msra.mxu0 %v83
    %225 = vmatprep.subr.mxu0 0.0
    %226 = vmatpush1.msra.mxu0 %v82
    %227 = vmatprep.subr.mxu0 0.0
    %228 = vmatpush1.msra.mxu0 %v81
    %229 = vmatprep.subr.mxu0 0.0
    %230 = vmatpush1.msra.mxu0 %v80
    %231 = vmatprep.subr.mxu0 0.0
    %232 = vmatpush1.msra.mxu0 %v79
    %233 = vmatprep.subr.mxu0 0.0
    %234 = vmatpush1.msra.mxu0 %v78
    %235 = vmatprep.subr.mxu0 0.0
    %236 = vmatpush1.msra.mxu0 %v77
    %237 = vmatprep.subr.mxu0 0.0
    %238 = vmatpush1.msra.mxu0 %v76
    %239 = vmatprep.subr.mxu0 0.0
    %240 = vmatpush1.msra.mxu0 %v75
    %241 = vmatprep.subr.mxu0 0.0
    %242 = vmatpush2.msra.mxu0 %v106
    %243 = vmatprep.subr.mxu0 0.0
    %244 = vmatpush2.msra.mxu0 %v105
    %245 = vmatprep.subr.mxu0 0.0
    %246 = vmatpush2.msra.mxu0 %v104
    %247 = vmatprep.subr.mxu0 0.0
    %248 = vmatpush2.msra.mxu0 %v103
    %249 = vmatprep.subr.mxu0 0.0
    %250 = vmatpush2.msra.mxu0 %v102
    %251 = vmatprep.subr.mxu0 0.0
    %252 = vmatpush2.msra.mxu0 %v101
    %253 = vmatprep.subr.mxu0 0.0
    %254 = vmatpush2.msra.mxu0 %v100
    %255 = vmatprep.subr.mxu0 0.0
    %256 = vmatpush2.msra.mxu0 %v99
    %257 = vmatprep.subr.mxu0 0.0
    %258 = vmatpush2.msra.mxu0 %v98
    %259 = vmatprep.subr.mxu0 0.0
    %260 = vmatpush2.msra.mxu0 %v97
    %261 = vmatprep.subr.mxu0 0.0
    %262 = vmatpush2.msra.mxu0 %v96
    %263 = vmatprep.subr.mxu0 0.0
    %264 = vmatpush2.msra.mxu0 %v95
    %265 = vmatprep.subr.mxu0 0.0
    %266 = vmatpush2.msra.mxu0 %v94
    %267 = vmatprep.subr.mxu0 0.0
    %268 = vmatpush2.msra.mxu0 %v93
    %269 = vmatprep.subr.mxu0 0.0
    %270 = vmatpush2.msra.mxu0 %v92
    %271 = vmatprep.subr.mxu0 0.0
    %272 = vmatpush2.msra.mxu0 %v91
    %273 = vmatprep.mubr.f32.mxu0 %v40
    %274 = vmatmul.mubr.f32.gmra.mxu0 %v39
    %v275 = vpop.f32.mrf.mxu0
    %v276 = vadd.f32 %v206, %v275
    %v277 = vpop.f32.mrf.mxu0
    %278 = vdwg.mxu0
    %279 = vmatprep.subr.mxu0 0.0
    %280 = vmatpush1.msra.mxu0 %v122
    %281 = vmatprep.subr.mxu0 0.0
    %282 = vmatpush1.msra.mxu0 %v121
    %283 = vmatprep.subr.mxu0 0.0
    %284 = vmatpush1.msra.mxu0 %v120
    %285 = vmatprep.subr.mxu0 0.0
    %286 = vmatpush1.msra.mxu0 %v119
    %287 = vmatprep.subr.mxu0 0.0
    %288 = vmatpush1.msra.mxu0 %v118
    %289 = vmatprep.subr.mxu0 0.0
    %290 = vmatpush1.msra.mxu0 %v117
    %291 = vmatprep.subr.mxu0 0.0
    %292 = vmatpush1.msra.mxu0 %v116
    %293 = vmatprep.subr.mxu0 0.0
    %294 = vmatpush1.msra.mxu0 %v115
    %295 = vmatprep.subr.mxu0 0.0
    %296 = vmatpush1.msra.mxu0 %v114
    %297 = vmatprep.subr.mxu0 0.0
    %298 = vmatpush1.msra.mxu0 %v113
    %299 = vmatprep.subr.mxu0 0.0
    %300 = vmatpush1.msra.mxu0 %v112
    %301 = vmatprep.subr.mxu0 0.0
    %302 = vmatpush1.msra.mxu0 %v111
    %303 = vmatprep.subr.mxu0 0.0
    %304 = vmatpush1.msra.mxu0 %v110
    %305 = vmatprep.subr.mxu0 0.0
    %306 = vmatpush1.msra.mxu0 %v109
    %307 = vmatprep.subr.mxu0 0.0
    %308 = vmatpush1.msra.mxu0 %v108
    %309 = vmatprep.subr.mxu0 0.0
    %310 = vmatpush1.msra.mxu0 %v107
    %311 = vmatprep.subr.mxu0 0.0
    %312 = vmatpush2.msra.mxu0 %v138
    %313 = vmatprep.subr.mxu0 0.0
    %314 = vmatpush2.msra.mxu0 %v137
    %315 = vmatprep.subr.mxu0 0.0
    %316 = vmatpush2.msra.mxu0 %v136
    %317 = vmatprep.subr.mxu0 0.0
    %318 = vmatpush2.msra.mxu0 %v135
    %319 = vmatprep.subr.mxu0 0.0
    %320 = vmatpush2.msra.mxu0 %v134
    %321 = vmatprep.subr.mxu0 0.0
    %322 = vmatpush2.msra.mxu0 %v133
    %323 = vmatprep.subr.mxu0 0.0
    %324 = vmatpush2.msra.mxu0 %v132
    %325 = vmatprep.subr.mxu0 0.0
    %326 = vmatpush2.msra.mxu0 %v131
    %327 = vmatprep.subr.mxu0 0.0
    %328 = vmatpush2.msra.mxu0 %v130
    %329 = vmatprep.subr.mxu0 0.0
    %330 = vmatpush2.msra.mxu0 %v129
    %331 = vmatprep.subr.mxu0 0.0
    %332 = vmatpush2.msra.mxu0 %v128
    %333 = vmatprep.subr.mxu0 0.0
    %334 = vmatpush2.msra.mxu0 %v127
    %335 = vmatprep.subr.mxu0 0.0
    %336 = vmatpush2.msra.mxu0 %v126
    %337 = vmatprep.subr.mxu0 0.0
    %338 = vmatpush2.msra.mxu0 %v125
    %339 = vmatprep.subr.mxu0 0.0
    %340 = vmatpush2.msra.mxu0 %v124
    %341 = vmatprep.subr.mxu0 0.0
    %342 = vmatpush2.msra.mxu0 %v123
    %343 = vmatprep.mubr.f32.mxu0 %v42
    %344 = vmatmul.mubr.f32.gmra.mxu0 %v41
    %v345 = vpop.f32.mrf.mxu0
    %v346 = vadd.f32 %v276, %v345
    %v347 = vpop.f32.mrf.mxu0
    %348 = vdwg.mxu0
    %v350 = vrot.slane %v346, 4
    %v352 = vadd.f32 %v346, %v350
    %v353 = vmul.f32 %v352, 0.5
    %v354 = vld [vmem:[%s2] sm:$0xff]
    %v355 = vld [vmem:[%s2 + $0x8] sm:$0xff]
    %v356 = vld [vmem:[%s2 + $0x10] sm:$0xff]
    %v357 = vld [vmem:[%s2 + $0x18] sm:$0xff]
    %v358 = vld [vmem:[%s2 + $0x20] sm:$0xff]
    %v359 = vld [vmem:[%s2 + $0x28] sm:$0xff]
    %v360 = vld [vmem:[%s2 + $0x30] sm:$0xff]
    %v361 = vld [vmem:[%s2 + $0x38] sm:$0xff]
    %v362 = vld [vmem:[%s2 + $0x40] sm:$0xff]
    %v363 = vld [vmem:[%s2 + $0x48] sm:$0xff]
    %v364 = vld [vmem:[%s2 + $0x50] sm:$0xff]
    %v365 = vld [vmem:[%s2 + $0x58] sm:$0xff]
    %v366 = vld [vmem:[%s2 + $0x60] sm:$0xff]
    %v367 = vld [vmem:[%s2 + $0x68] sm:$0xff]
    %v368 = vld [vmem:[%s2 + $0x70] sm:$0xff]
    %v369 = vld [vmem:[%s2 + $0x78] sm:$0xff]
    %v370 = vld [vmem:[%s3] sm:$0x1]
    %v372 = vlaneseq
    %v373 = vshrl.u32 %v372, 7
    %v374 = vsub.s32 0, %v373
    %v375 = vrot.slane %v370, %v374
    %377 = vmatprep.subr.mxu0 0.0
    %378 = vmatpush1.xpose.msra.mxu0 %v369
    %379 = vmatprep.subr.mxu0 0.0
    %380 = vmatpush1.xpose.msra.mxu0 %v368
    %381 = vmatprep.subr.mxu0 0.0
    %382 = vmatpush1.xpose.msra.mxu0 %v367
    %383 = vmatprep.subr.mxu0 0.0
    %384 = vmatpush1.xpose.msra.mxu0 %v366
    %385 = vmatprep.subr.mxu0 0.0
    %386 = vmatpush1.xpose.msra.mxu0 %v365
    %387 = vmatprep.subr.mxu0 0.0
    %388 = vmatpush1.xpose.msra.mxu0 %v364
    %389 = vmatprep.subr.mxu0 0.0
    %390 = vmatpush1.xpose.msra.mxu0 %v363
    %391 = vmatprep.subr.mxu0 0.0
    %392 = vmatpush1.xpose.msra.mxu0 %v362
    %393 = vmatprep.subr.mxu0 0.0
    %394 = vmatpush1.xpose.msra.mxu0 %v361
    %395 = vmatprep.subr.mxu0 0.0
    %396 = vmatpush1.xpose.msra.mxu0 %v360
    %397 = vmatprep.subr.mxu0 0.0
    %398 = vmatpush1.xpose.msra.mxu0 %v359
    %399 = vmatprep.subr.mxu0 0.0
    %400 = vmatpush1.xpose.msra.mxu0 %v358
    %401 = vmatprep.subr.mxu0 0.0
    %402 = vmatpush1.xpose.msra.mxu0 %v357
    %403 = vmatprep.subr.mxu0 0.0
    %404 = vmatpush1.xpose.msra.mxu0 %v356
    %405 = vmatprep.subr.mxu0 0.0
    %406 = vmatpush1.xpose.msra.mxu0 %v355
    %407 = vmatprep.subr.mxu0 0.0
    %408 = vmatpush1.xpose.msra.mxu0 %v354
    %409 = vmatprep.subr.mxu0 0.0
    %410 = vmatpush2.xpose.msra.mxu0 0.0
    %411 = vmatprep.subr.mxu0 0.0
    %412 = vmatpush2.xpose.msra.mxu0 0.0
    %413 = vmatprep.subr.mxu0 0.0
    %414 = vmatpush2.xpose.msra.mxu0 0.0
    %415 = vmatprep.subr.mxu0 0.0
    %416 = vmatpush2.xpose.msra.mxu0 0.0
    %417 = vmatprep.subr.mxu0 0.0
    %418 = vmatpush2.xpose.msra.mxu0 0.0
    %419 = vmatprep.subr.mxu0 0.0
    %420 = vmatpush2.xpose.msra.mxu0 0.0
    %421 = vmatprep.subr.mxu0 0.0
    %422 = vmatpush2.xpose.msra.mxu0 0.0
    %423 = vmatprep.subr.mxu0 0.0
    %424 = vmatpush2.xpose.msra.mxu0 0.0
    %425 = vmatprep.subr.mxu0 0.0
    %426 = vmatpush2.xpose.msra.mxu0 0.0
    %427 = vmatprep.subr.mxu0 0.0
    %428 = vmatpush2.xpose.msra.mxu0 0.0
    %429 = vmatprep.subr.mxu0 0.0
    %430 = vmatpush2.xpose.msra.mxu0 0.0
    %431 = vmatprep.subr.mxu0 0.0
    %432 = vmatpush2.xpose.msra.mxu0 0.0
    %433 = vmatprep.subr.mxu0 0.0
    %434 = vmatpush2.xpose.msra.mxu0 0.0
    %435 = vmatprep.subr.mxu0 0.0
    %436 = vmatpush2.xpose.msra.mxu0 0.0
    %437 = vmatprep.subr.mxu0 0.0
    %438 = vmatpush2.xpose.msra.mxu0 0.0
    %439 = vmatprep.subr.mxu0 0.0
    %440 = vmatpush2.xpose.msra.mxu0 0.0
    %441 = vmatprep.mubr.f32.mxu0 0.0
    %442 = vmatmul.mubr.f32.gmra.mxu0 %v353
    %v443 = vpop.f32.mrf.mxu0
    %v444 = vadd.f32 %v375, %v443
    %v445 = vpop.f32.mrf.mxu0
    %446 = vdwg.mxu0
    %v447 = vld [vmem:[%s4] sm:$0xff]
    %v448 = vld [vmem:[%s4 + $0x8] sm:$0xff]
    %v449 = vld [vmem:[%s4 + $0x10] sm:$0xff]
    %v450 = vld [vmem:[%s4 + $0x18] sm:$0xff]
    %v451 = vld [vmem:[%s4 + $0x20] sm:$0xff]
    %v452 = vld [vmem:[%s4 + $0x28] sm:$0xff]
    %v453 = vld [vmem:[%s4 + $0x30] sm:$0xff]
    %v454 = vld [vmem:[%s4 + $0x38] sm:$0xff]
    %v455 = vld [vmem:[%s4 + $0x40] sm:$0xff]
    %v456 = vld [vmem:[%s4 + $0x48] sm:$0xff]
    %v457 = vld [vmem:[%s4 + $0x50] sm:$0xff]
    %v458 = vld [vmem:[%s4 + $0x58] sm:$0xff]
    %v459 = vld [vmem:[%s4 + $0x60] sm:$0xff]
    %v460 = vld [vmem:[%s4 + $0x68] sm:$0xff]
    %v461 = vld [vmem:[%s4 + $0x70] sm:$0xff]
    %v462 = vld [vmem:[%s4 + $0x78] sm:$0xff]
    %v464 = vrot.slane %v444, 4
    %vm466 = vcmask 1043456
    %v467 = vsel %vm466, %v444, %v464
    %v468 = vadd.f32 %v447, %v467
    %v469 = vadd.f32 %v448, %v467
    %v470 = vadd.f32 %v449, %v467
    %v471 = vadd.f32 %v450, %v467
    %v472 = vadd.f32 %v451, %v467
    %v473 = vadd.f32 %v452, %v467
    %v474 = vadd.f32 %v453, %v467
    %v475 = vadd.f32 %v454, %v467
    %v476 = vadd.f32 %v455, %v467
    %v477 = vadd.f32 %v456, %v467
    %v478 = vadd.f32 %v457, %v467
    %v479 = vadd.f32 %v458, %v467
    %v480 = vadd.f32 %v459, %v467
    %v481 = vadd.f32 %v460, %v467
    %v482 = vadd.f32 %v461, %v467
    %v483 = vadd.f32 %v462, %v467
    %v484 = vld [vmem:[%s5] sm:$0x1]
    %v486 = vlaneseq
    %v487 = vshrl.u32 %v486, 7
    %v488 = vsub.s32 0, %v487
    %v489 = vrot.slane %v484, %v488
    %491 = vmatprep.subr.mxu0 0.0
    %492 = vmatpush1.xpose.msra.mxu0 %v483
    %493 = vmatprep.subr.mxu0 0.0
    %494 = vmatpush1.xpose.msra.mxu0 %v482
    %495 = vmatprep.subr.mxu0 0.0
    %496 = vmatpush1.xpose.msra.mxu0 %v481
    %497 = vmatprep.subr.mxu0 0.0
    %498 = vmatpush1.xpose.msra.mxu0 %v480
    %499 = vmatprep.subr.mxu0 0.0
    %500 = vmatpush1.xpose.msra.mxu0 %v479
    %501 = vmatprep.subr.mxu0 0.0
    %502 = vmatpush1.xpose.msra.mxu0 %v478
    %503 = vmatprep.subr.mxu0 0.0
    %504 = vmatpush1.xpose.msra.mxu0 %v477
    %505 = vmatprep.subr.mxu0 0.0
    %506 = vmatpush1.xpose.msra.mxu0 %v476
    %507 = vmatprep.subr.mxu0 0.0
    %508 = vmatpush1.xpose.msra.mxu0 %v475
    %509 = vmatprep.subr.mxu0 0.0
    %510 = vmatpush1.xpose.msra.mxu0 %v474
    %511 = vmatprep.subr.mxu0 0.0
    %512 = vmatpush1.xpose.msra.mxu0 %v473
    %513 = vmatprep.subr.mxu0 0.0
    %514 = vmatpush1.xpose.msra.mxu0 %v472
    %515 = vmatprep.subr.mxu0 0.0
    %516 = vmatpush1.xpose.msra.mxu0 %v471
    %517 = vmatprep.subr.mxu0 0.0
    %518 = vmatpush1.xpose.msra.mxu0 %v470
    %519 = vmatprep.subr.mxu0 0.0
    %520 = vmatpush1.xpose.msra.mxu0 %v469
    %521 = vmatprep.subr.mxu0 0.0
    %522 = vmatpush1.xpose.msra.mxu0 %v468
    %523 = vmatprep.subr.mxu0 0.0
    %524 = vmatpush2.xpose.msra.mxu0 0.0
    %525 = vmatprep.subr.mxu0 0.0
    %526 = vmatpush2.xpose.msra.mxu0 0.0
    %527 = vmatprep.subr.mxu0 0.0
    %528 = vmatpush2.xpose.msra.mxu0 0.0
    %529 = vmatprep.subr.mxu0 0.0
    %530 = vmatpush2.xpose.msra.mxu0 0.0
    %531 = vmatprep.subr.mxu0 0.0
    %532 = vmatpush2.xpose.msra.mxu0 0.0
    %533 = vmatprep.subr.mxu0 0.0
    %534 = vmatpush2.xpose.msra.mxu0 0.0
    %535 = vmatprep.subr.mxu0 0.0
    %536 = vmatpush2.xpose.msra.mxu0 0.0
    %537 = vmatprep.subr.mxu0 0.0
    %538 = vmatpush2.xpose.msra.mxu0 0.0
    %539 = vmatprep.subr.mxu0 0.0
    %540 = vmatpush2.xpose.msra.mxu0 0.0
    %541 = vmatprep.subr.mxu0 0.0
    %542 = vmatpush2.xpose.msra.mxu0 0.0
    %543 = vmatprep.subr.mxu0 0.0
    %544 = vmatpush2.xpose.msra.mxu0 0.0
    %545 = vmatprep.subr.mxu0 0.0
    %546 = vmatpush2.xpose.msra.mxu0 0.0
    %547 = vmatprep.subr.mxu0 0.0
    %548 = vmatpush2.xpose.msra.mxu0 0.0
    %549 = vmatprep.subr.mxu0 0.0
    %550 = vmatpush2.xpose.msra.mxu0 0.0
    %551 = vmatprep.subr.mxu0 0.0
    %552 = vmatpush2.xpose.msra.mxu0 0.0
    %553 = vmatprep.subr.mxu0 0.0
    %554 = vmatpush2.xpose.msra.mxu0 0.0
    %555 = vmatprep.mubr.f32.mxu0 0.0
    %556 = vmatmul.mubr.f32.gmra.mxu0 %v346
    %v557 = vpop.f32.mrf.mxu0
    %v558 = vadd.f32 %v489, %v557
    %v559 = vpop.f32.mrf.mxu0
    %560 = vdwg.mxu0
    %561 = vst [vmem:[%s6] sm:$0xff] %v558
    // Predicated region
    $region30: #{model_forward.1} parent=1 // pred_check
      _
    $region31: #{model_forward.1} parent=1 // pred_check_branch
      %563 = sbr.rel (0) target = $region33
    $region32: #{model_forward.1} parent=1 // pred_region
      _
    $region33: #{model_forward.1} parent=1 // pred_fallthru
      _
    // Predicated region
    $region34: #{model_forward.1} parent=1 // pred_check
      _
    $region35: #{model_forward.1} parent=1 // pred_check_branch
      %565 = sbr.rel (0) target = $region37
    $region36: #{model_forward.1} parent=1 // pred_region
      _
    $region37: #{model_forward.1} parent=1 // pred_fallthru
      _
    %566 = vsyncpa [#allocation3], 1

</llo_original>
